<compile_context>
chip_gen: v5e
topology: v5e:2x2
jax: 0.10.0
libtpu: 0.0.40
codegen_flags: <defaults>
</compile_context>

<pallas_src>
import jax
import jax.numpy as jnp
from jax import lax
from jax.experimental import pallas as pl
from jax.experimental.pallas import tpu as pltpu


# ---------------------------------------------------------------------------
# Kernels
# ---------------------------------------------------------------------------

def cam_fused_kernel(gamma_ref, x_ref, o_ref):
    """Whole-slab CAM: E = X @ X^T -> softmax -> gamma * (A @ X) + X."""
    x = x_ref[...]                                       # (bt, C, N_pad), native dtype
    # Batched Gram contracting the lane (N) axis directly — no transpose.
    energy = lax.dot_general(
        x, x,
        dimension_numbers=(((2,), (2,)), ((0,), (0,))),
        preferred_element_type=jnp.float32)              # (bt, C, C) f32
    row_min = jnp.min(energy, axis=-1, keepdims=True)
    e = jnp.exp(row_min - energy)
    attn = e / jnp.sum(e, axis=-1, keepdims=True)        # exact normalizer
    out = lax.dot_general(
        attn.astype(x.dtype), x,
        dimension_numbers=(((2,), (1,)), ((0,), (0,))),
        preferred_element_type=jnp.float32)              # (bt, C, N_pad) f32
    gamma = gamma_ref[0]
    o_ref[...] = (gamma * out).astype(o_ref.dtype) + x


def cam_energy_kernel(x_ref, attn_ref):
    """Pass 1: accumulate E = X @ X^T directly into the output block over
    N-tiles; apply the min-shift softmax in place on the last tile."""
    k = pl.program_id(1)

    @pl.when(k == 0)
    def _():
        attn_ref[...] = jnp.zeros_like(attn_ref)

    x = x_ref[...]                                       # (bt, C, TN), native dtype
    attn_ref[...] += lax.dot_general(
        x, x,
        dimension_numbers=(((2,), (2,)), ((0,), (0,))),
        preferred_element_type=jnp.float32)              # (bt, C, C) f32

    @pl.when(k == pl.num_programs(1) - 1)
    def _():
        energy = attn_ref[...]
        row_min = jnp.min(energy, axis=-1, keepdims=True)
        e = jnp.exp(row_min - energy)
        attn_ref[...] = e / jnp.sum(e, axis=-1, keepdims=True)


def cam_apply_kernel(gamma_ref, attn_ref, x_ref, o_ref):
    """Pass 2: out_tile = gamma * (attention @ x_tile) + x_tile."""
    x = x_ref[...]                                       # (bt, C, TN), native dtype
    attn = attn_ref[...].astype(x.dtype)                 # MXU-native operand dtype
    out = lax.dot_general(
        attn, x,
        dimension_numbers=(((2,), (1,)), ((0,), (0,))),
        preferred_element_type=jnp.float32)              # (bt, C, TN) f32
    gamma = gamma_ref[0]
    o_ref[...] = (gamma * out).astype(o_ref.dtype) + x   # no f32 upcast of x


# ---------------------------------------------------------------------------
# Tiling / VMEM heuristics
# ---------------------------------------------------------------------------

def _vmem_config():
    """Generation-aware (block budget, vmem_limit_bytes)."""
    cap = 64 * 1024 * 1024                         # conservative default (v7x per-TC)
    try:
        cap = int(pltpu.get_tpu_info().vmem_capacity_bytes)
    except Exception:
        pass
    vmem_limit = max(min(int(cap * 0.75), cap - 12 * 1024 * 1024), 16 * 1024 * 1024)
    budget = max(min(cap // 2, vmem_limit - 8 * 1024 * 1024), 8 * 1024 * 1024)
    return budget, vmem_limit


def _pick_bt(B, C):
    """Batch-pack only for tiny C (batched dot_general does not merge batches
    into one MXU op); cap at B // 2 so a parallel grid axis >= 2 survives for
    v7x megacore."""
    if C >= 128 or B == 1:
        return 1
    bt = max(1, B // 2)
    while bt > 1 and (B % bt != 0 or bt * C > 512):
        bt -= 1
    return bt


def _largest_divisor_tile(n_pad, max_cols, align):
    """Largest multiple of `align` dividing n_pad with value <= max_cols."""
    best = None
    t = align
    while t <= n_pad:
        if n_pad % t == 0 and t <= max_cols:
            best = t
        t += align
    return best


def _pick_tn(n_pad, per_col_bytes, fixed_bytes, budget):
    avail = max(budget - fixed_bytes, 0)
    max_cols = max(avail // max(per_col_bytes, 1), 128)
    max_cols = min(max_cols, n_pad)
    # Prefer 256-aligned tiles (v6e/v7x 256x256 MXU); 128 always works (v5e).
    for align in (256, 128):
        t = _largest_divisor_tile(n_pad, max_cols, align)
        if t is not None:
            return t
    return min(n_pad, 128)


def _fused_fits(bt, C, n_pad, dsize, budget):
    blocks = 4 * bt * C * n_pad * dsize            # x + out blocks, double-buffered
    f32_tmp = bt * C * n_pad * 4                   # attention @ x f32 accumulator
    cc_tmp = bt * C * C * (3 * 4 + dsize)          # energy / exp / attn temporaries
    return blocks + f32_tmp + cc_tmp <= budget


# ---------------------------------------------------------------------------
# Forward
# ---------------------------------------------------------------------------

def _cam_fused(x_flat, gamma, bt, vmem_limit):
    B, C, N_pad = x_flat.shape
    dsize = x_flat.dtype.itemsize
    return pl.pallas_call(
        cam_fused_kernel,
        out_shape=jax.ShapeDtypeStruct((B, C, N_pad), x_flat.dtype),
        grid_spec=pltpu.PrefetchScalarGridSpec(
            num_scalar_prefetch=0,
            grid=(B // bt,),
            in_specs=[
                pl.BlockSpec(memory_space=pltpu.MemorySpace.SMEM),    # gamma
                pl.BlockSpec((bt, C, N_pad), lambda b: (b, 0, 0)),    # x
            ],
            out_specs=pl.BlockSpec((bt, C, N_pad), lambda b: (b, 0, 0))),
        compiler_params=pltpu.CompilerParams(
            dimension_semantics=("parallel",),
            vmem_limit_bytes=vmem_limit),
        cost_estimate=pl.CostEstimate(
            flops=4 * B * C * C * N_pad,
            transcendentals=B * C * C,
            bytes_accessed=2 * B * C * N_pad * dsize),
    )(gamma, x_flat)


def _cam_two_pass(x_flat, gamma, bt, budget, vmem_limit):
    B, C, N_pad = x_flat.shape
    dsize = x_flat.dtype.itemsize

    # Pass 1 (FLOP-heavy, 2*C^2*N): only x is tiled over N, the (bt, C, C)
    # output block stays resident, so its x-tile can be larger than pass 2's.
    # (For B == 1 on v7x a C-row tiling of the Gram output would recover the
    #  second TensorCore; omitted here for simplicity.)
    tn1 = _pick_tn(N_pad,
                   per_col_bytes=2 * bt * C * dsize,
                   fixed_bytes=3 * bt * C * C * 4,
                   budget=budget)
    attn = pl.pallas_call(
        cam_energy_kernel,
        out_shape=jax.ShapeDtypeStruct((B, C, C), jnp.float32),
        grid_spec=pltpu.PrefetchScalarGridSpec(
            num_scalar_prefetch=0,
            grid=(B // bt, N_pad // tn1),
            in_specs=[pl.BlockSpec((bt, C, tn1), lambda b, k: (b, 0, k))],
            out_specs=pl.BlockSpec((bt, C, C), lambda b, k: (b, 0, 0))),
        compiler_params=pltpu.CompilerParams(
            dimension_semantics=("parallel", "arbitrary"),
            vmem_limit_bytes=vmem_limit),
        cost_estimate=pl.CostEstimate(
            flops=2 * B * C * C * N_pad,
            transcendentals=B * C * C,
            bytes_accessed=B * C * N_pad * dsize + B * C * C * 4),
    )(x_flat)

    # Pass 2 (memory-bound): every (b, k) tile is independent -> both axes parallel.
    tn2 = _pick_tn(N_pad,
                   per_col_bytes=bt * C * (4 * dsize + 4),
                   fixed_bytes=bt * C * C * (2 * 4 + dsize),
                   budget=budget)
    out_flat = pl.pallas_call(
        cam_apply_kernel,
        out_shape=jax.ShapeDtypeStruct((B, C, N_pad), x_flat.dtype),
        grid_spec=pltpu.PrefetchScalarGridSpec(
            num_scalar_prefetch=0,
            grid=(B // bt, N_pad // tn2),
            in_specs=[
                pl.BlockSpec(memory_space=pltpu.MemorySpace.SMEM),    # gamma
                pl.BlockSpec((bt, C, C), lambda b, k: (b, 0, 0)),     # attention
                pl.BlockSpec((bt, C, tn2), lambda b, k: (b, 0, k)),   # x
            ],
            out_specs=pl.BlockSpec((bt, C, tn2), lambda b, k: (b, 0, k))),
        compiler_params=pltpu.CompilerParams(
            dimension_semantics=("parallel", "parallel"),
            vmem_limit_bytes=vmem_limit),
        cost_estimate=pl.CostEstimate(
            flops=2 * B * C * C * N_pad + 3 * B * C * N_pad,
            transcendentals=0,
            bytes_accessed=2 * B * C * N_pad * dsize + B * C * C * 4),
    )(gamma, attn, x_flat)
    return out_flat


def cam_module_forward(x, gamma, *, force_two_pass=False):
    """x: (B, C, H, W), gamma: (1,).  Matches CAM_Module.forward."""
    B, C, H, W = x.shape
    N = H * W
    dsize = x.dtype.itemsize

    # Lane-dense layout: pad N up to a multiple of 128.  Zero padding leaves
    # both X @ X^T and attention @ X unchanged; the pad is sliced off below.
    N_pad = ((N + 127) // 128) * 128
    x_flat = x.reshape(B, C, N)
    if N_pad != N:
        x_flat = jnp.pad(x_flat, ((0, 0), (0, 0), (0, N_pad - N)))

    budget, vmem_limit = _vmem_config()
    bt = _pick_bt(B, C)

    if not force_two_pass and _fused_fits(bt, C, N_pad, dsize, budget):
        out_flat = _cam_fused(x_flat, gamma, bt, vmem_limit)
    else:
        out_flat = _cam_two_pass(x_flat, gamma, bt, budget, vmem_limit)

    return out_flat[:, :, :N].reshape(B, C, H, W)


def cam_module_ref(x, gamma):
    """Pure-JAX reference matching the PyTorch forward."""
    B, C, H, W = x.shape
    xf = x.reshape(B, C, H * W)
    energy = jnp.einsum("bcn,bdn->bcd", xf, xf)
    energy_new = jnp.max(energy, axis=-1, keepdims=True) - energy
    attention = jax.nn.softmax(energy_new, axis=-1)
    out = jnp.einsum("bcd,bdn->bcn", attention, xf).reshape(B, C, H, W)
    return gamma[0] * out + x


if __name__ == "__main__":
    key = jax.random.PRNGKey(0)
    B, C, H, W = 2, 4, 16, 16
    x = jax.random.normal(key, (B, C, H, W), dtype=jnp.float32)

    # Deterministic params matching nn.Parameter(torch.zeros(1)); also test a
    # non-zero gamma so the attention path is actually exercised.
    gamma_zero = jnp.zeros((1,), dtype=jnp.float32)
    gamma_test = jnp.array([0.5], dtype=jnp.float32)

    # Exercise both the fused single-pass path and the two-pass fallback.
    for force_two_pass in (False, True):
        for gamma, tol in ((gamma_zero, 1e-5), (gamma_test, 1e-3)):
            out = jax.block_until_ready(
                cam_module_forward(x, gamma, force_two_pass=force_two_pass))
            ref = cam_module_ref(x, gamma)
            assert out.shape == (B, C, H, W)
            err = float(jnp.max(jnp.abs(out - ref)))
            assert err < tol, (
                f"two_pass={force_two_pass} max abs err {err} (tol {tol})")

    print("KERNEL_OK")
</pallas_src>

<mosaic_0001>
module attributes {stable_mosaic.version = 11 : i64} {
  func.func @cam_fused_kernel(%arg0: i32, %arg1: memref<1xf32, #tpu.memory_space<smem>>, %arg2: memref<1x4x256xf32, #tpu.memory_space<vmem>>, %arg3: memref<1x4x256xf32, #tpu.memory_space<vmem>>) attributes {dimension_semantics = [#tpu.dimension_semantics<parallel>], iteration_bounds = array<i64: 2>, scalar_prefetch = 0 : i64, scratch_operands = 0 : i64, tpu.core_type = #tpu.core_type<tc>, window_params = [{transform_indices = @transform_0, window_bounds = array<i64: 1>}, {transform_indices = @transform_1, window_bounds = array<i64: 1, 4, 256>}, {transform_indices = @transform_2, window_bounds = array<i64: 1, 4, 256>}]} {
    %c0 = arith.constant 0 : index
    %c0_0 = arith.constant 0 : index
    %c0_1 = arith.constant 0 : index
    %0 = vector.load %arg2[%c0, %c0_0, %c0_1] : memref<1x4x256xf32, #tpu.memory_space<vmem>>, vector<1x4x256xf32>
    %cst = arith.constant dense<0.000000e+00> : vector<1x4x4xf32>
    %1 = tpu.matmul %0, %0, %cst {dimension_numbers = #tpu.dot_dimension_numbers<[2], [2], [1], [1], [0, 0, 0, 1, 1, 1], [0], [0]>} : vector<1x4x256xf32>, vector<1x4x256xf32>, vector<1x4x4xf32> -> vector<1x4x4xf32>
    %cst_2 = arith.constant dense<0x7F800000> : vector<1x4xf32>
    %2 = vector.multi_reduction <minimumf>, %1, %cst_2 [2] : vector<1x4x4xf32> to vector<1x4xf32>
    %3 = vector.shape_cast %2 : vector<1x4xf32> to vector<1x4x1xf32>
    %4 = vector.broadcast %3 : vector<1x4x1xf32> to vector<1x4x4xf32>
    %5 = arith.subf %4, %1 : vector<1x4x4xf32>
    %6 = math.exp %5 : vector<1x4x4xf32>
    %cst_3 = arith.constant dense<0.000000e+00> : vector<1x4xf32>
    %7 = vector.multi_reduction <add>, %6, %cst_3 [2] : vector<1x4x4xf32> to vector<1x4xf32>
    %8 = vector.shape_cast %7 : vector<1x4xf32> to vector<1x4x1xf32>
    %9 = vector.broadcast %8 : vector<1x4x1xf32> to vector<1x4x4xf32>
    %10 = arith.divf %6, %9 : vector<1x4x4xf32>
    %cst_4 = arith.constant dense<0.000000e+00> : vector<1x4x256xf32>
    %11 = tpu.matmul %10, %0, %cst_4 {dimension_numbers = #tpu.dot_dimension_numbers<[2], [1], [1], [2], [0, 0, 0, 1, 1, 2], [0], [0]>} : vector<1x4x4xf32>, vector<1x4x256xf32>, vector<1x4x256xf32> -> vector<1x4x256xf32>
    %c0_5 = arith.constant 0 : index
    %12 = memref.load %arg1[%c0_5] : memref<1xf32, #tpu.memory_space<smem>>
    %13 = vector.broadcast %12 : f32 to vector<1x4x256xf32>
    %14 = arith.mulf %13, %11 : vector<1x4x256xf32>
    %15 = arith.addf %14, %0 : vector<1x4x256xf32>
    %c0_6 = arith.constant 0 : index
    %c0_7 = arith.constant 0 : index
    %c0_8 = arith.constant 0 : index
    %16 = vector.load %arg3[%c0_6, %c0_7, %c0_8] : memref<1x4x256xf32, #tpu.memory_space<vmem>>, vector<1x4x256xf32>
    tpu.vector_store %arg3[%c0_6, %c0_7, %c0_8], %15 {strides = array<i32>} : memref<1x4x256xf32, #tpu.memory_space<vmem>>, vector<1x4x256xf32>,
    return
  }
  func.func @transform_0(%arg0: i32) -> i32 {
    %c0_i32 = arith.constant 0 : i32
    %c0_i32_0 = arith.constant 0 : i32
    return %c0_i32 : i32
  }
  func.func @transform_1(%arg0: i32) -> (i32, i32, i32) {
    %c0_i32 = arith.constant 0 : i32
    %c0_i32_0 = arith.constant 0 : i32
    %c0_i32_1 = arith.constant 0 : i32
    return %arg0, %c0_i32, %c0_i32_0 : i32, i32, i32
  }
  func.func @transform_2(%arg0: i32) -> (i32, i32, i32) {
    %c0_i32 = arith.constant 0 : i32
    %c0_i32_0 = arith.constant 0 : i32
    %c0_i32_1 = arith.constant 0 : i32
    return %arg0, %c0_i32, %c0_i32_0 : i32, i32, i32
  }
}

</mosaic_0001>

<llo_original>
// kernel: tpu_custom_call.1
$region0: #{tpu_custom_call.1}
  #allocation0 [shape = 'u32[]', space=smem, size = 0x4, offset = 0x4, fixed_abs, tag = 'smem constant byte address 0x4 - core index']
  #allocation1 [shape = 'u32[72,128]{1,0:T(1,128)}', space=vmem, size = 0x9000, scoped, tag = 'internal scratch']
  #allocation2 [shape = 'f32[1]{0:T(128)S(6)}', space=smem, size = 0x200, scoped, tag = 'scoped memory for tpu_custom_call.1']
  %s0 = inlined_call_operand.<no memory space> [shape: f32[1], index: 0, kind: input, shape index: {}]
  %s1 = inlined_call_operand.hbm [shape: f32[2,4,256], index: 1, kind: input, shape index: {}]
  %s2 = inlined_call_operand.hbm [shape: f32[2,4,256], index: 2, kind: output, shape index: {}]
  %s3 = sld [smem:[#allocation0]]
  $region45: #{tpu_custom_call.1} parent=0
    _
  %s5 = ssub.s32 1, %s3
  %s6 = scalar_select 0, %s5, %s3
  %7 = sst [smem:[#allocation2]] %s0
  $region1: #{tpu_custom_call.1} parent=0
    #allocation3 [shape = 'u8[8192]{0}', space=vmem, size = 0x2000, scoped, tag = 'input window, operand 1']
    #allocation4 [shape = 's32[2]{0}', space=sflag, size = 0x8, scoped, tag = 'scoped memory for tpu_custom_call.1']
    #allocation5 [shape = 's32[2]{0}', space=sflag, size = 0x8, scoped, tag = 'scoped memory for tpu_custom_call.1']
    #allocation6 [shape = 'u8[8192]{0}', space=vmem, size = 0x2000, scoped, tag = 'output window, operand 0']
    %8 = vsyncpa [#allocation4], 0
    %s9 = scalar_lea.sflag [#allocation4], 1
    %10 = vsyncpa %s9, 0
    %11 = vsyncpa [#allocation5], 0
    %s12 = scalar_lea.sflag [#allocation5], 1
    %13 = vsyncpa %s12, 0
    loop: start=0, step=1, limit=4
    $region2: #{tpu_custom_call.1} parent=1 // loop_pre_header
      _
    $region3: #{tpu_custom_call.1} parent=1 // loop_header
      %s15 = sphi 0, %s19
      %p16 = scmp.ge.s32.totalorder %s15, 4
      %s23 = sphi 0, %s23
      %s25 = sphi 0, %s23
      %s26 = sphi 0, %s25
      %s40 = sphi 0, %s26
      %s46 = sphi 0, %s48
      %s49 = sphi 0, %s46
      %s50 = sphi 0, %s49
      %s66 = sphi 0, %s50
      %s72 = sphi 0, %s74
      %s75 = sphi 0, %s72
      %s76 = sphi 0, %s75
      %s92 = sphi 0, %s76
    $region4: #{tpu_custom_call.1} parent=1 // loop_header_branch
      %18 = sbr.rel (%p16) target = $region8
    $region5: #{tpu_custom_call.1} parent=1 // loop_body
      %s20 = ssub.s32 %s15, 1
      %s21 = ssub.s32 %s15, 2
      %s22 = sadd.s32 %s15, 1
      %s24 = sadd.s32 %s23, 1
      %p27 = scmp.eq.s32.totalorder %s15, 1
      %p28 = scmp.ne.s32.totalorder %s23, %s25
      %p29 = scmp.eq.s32.totalorder %s15, 0
      %p30 = por %p28, %p29
      %p31 = scmp.ne.s32.totalorder %s23, %s25
      %p32 = scmp.eq.s32.totalorder %s20, 1
      %p33 = por %p31, %p32
      %p34 = scmp.ne.s32.totalorder %s25, %s26
      %p35 = scmp.eq.s32.totalorder %s20, 0
      %p36 = por %p34, %p35
      %p37 = scmp.ne.s32.totalorder %s25, %s26
      %p38 = scmp.eq.s32.totalorder %s21, 1
      %p39 = por %p37, %p38
      %p41 = scmp.ne.s32.totalorder %s26, %s40
      %p42 = scmp.eq.s32.totalorder %s21, 0
      %p43 = por %p41, %p42
      %s44 = ssub.s32 %s15, %s22
      %p45 = scmp.eq.s32.totalorder %s44, 0
      %s47 = sadd.s32 %s46, 1
      %s48 = scalar_select %p45, %s46, %s47
      %p51 = pneg %p45
      %p52 = scmp.eq.s32.totalorder %s15, 1
      %p53 = por %p51, %p52
      %p54 = scmp.ne.s32.totalorder %s46, %s49
      %p55 = scmp.eq.s32.totalorder %s15, 0
      %p56 = por %p54, %p55
      %p57 = scmp.ne.s32.totalorder %s46, %s49
      %p58 = scmp.eq.s32.totalorder %s20, 1
      %p59 = por %p57, %p58
      %p60 = scmp.ne.s32.totalorder %s49, %s50
      %p61 = scmp.eq.s32.totalorder %s20, 0
      %p62 = por %p60, %p61
      %p63 = scmp.ne.s32.totalorder %s49, %s50
      %p64 = scmp.eq.s32.totalorder %s21, 1
      %p65 = por %p63, %p64
      %p67 = scmp.ne.s32.totalorder %s50, %s66
      %p68 = scmp.eq.s32.totalorder %s21, 0
      %p69 = por %p67, %p68
      %s70 = ssub.s32 %s15, %s22
      %p71 = scmp.eq.s32.totalorder %s70, 0
      %s73 = sadd.s32 %s72, 1
      %s74 = scalar_select %p71, %s72, %s73
      %p77 = pneg %p71
      %p78 = scmp.eq.s32.totalorder %s15, 1
      %p79 = por %p77, %p78
      %p80 = scmp.ne.s32.totalorder %s72, %s75
      %p81 = scmp.eq.s32.totalorder %s15, 0
      %p82 = por %p80, %p81
      %p83 = scmp.ne.s32.totalorder %s72, %s75
      %p84 = scmp.eq.s32.totalorder %s20, 1
      %p85 = por %p83, %p84
      %p86 = scmp.ne.s32.totalorder %s75, %s76
      %p87 = scmp.eq.s32.totalorder %s20, 0
      %p88 = por %p86, %p87
      %p89 = scmp.ne.s32.totalorder %s75, %s76
      %p90 = scmp.eq.s32.totalorder %s21, 1
      %p91 = por %p89, %p90
      %p93 = scmp.ne.s32.totalorder %s76, %s92
      %p94 = scmp.eq.s32.totalorder %s21, 0
      %p95 = por %p93, %p94
      %p96 = scmp.le.s32.totalorder 1, %s15
      %p97 = scmp.lt.s32.totalorder %s15, 3
      %p98 = pnand %p96, %p97
      %p99 = pneg %p98
      // Predicated region
      $region9: #{tpu_custom_call.1} parent=5 // pred_check
        _
      $region10: #{tpu_custom_call.1} parent=5 // pred_check_branch
        %101 = sbr.rel (%p98) target = $region12
      $region11: #{tpu_custom_call.1} parent=5 // pred_region
        %s102 = ssub.s32 %s15, 1
        // Predicated region
        $region13: #{tpu_custom_call.1} parent=11 // pred_check
          %p103 = pneg %p36
        $region14: #{tpu_custom_call.1} parent=11 // pred_check_branch
          %105 = sbr.rel (%p103) target = $region16
        $region15: #{tpu_custom_call.1} parent=11 // pred_region
          _
        $region16: #{tpu_custom_call.1} parent=11 // pred_fallthru
          _
      $region12: #{tpu_custom_call.1} parent=5 // pred_fallthru
        _
      %p106 = scmp.lt.s32.totalorder %s15, 2
      // Predicated region
      $region17: #{tpu_custom_call.1} parent=5 // pred_check
        %p107 = pneg %p106
      $region18: #{tpu_custom_call.1} parent=5 // pred_check_branch
        %109 = sbr.rel (%p107) target = $region20
      $region19: #{tpu_custom_call.1} parent=5 // pred_region
        // Predicated region
        $region21: #{tpu_custom_call.1} parent=19 // pred_check
          %p110 = pneg %p56
        $region22: #{tpu_custom_call.1} parent=19 // pred_check_branch
          %112 = sbr.rel (%p110) target = $region24
        $region23: #{tpu_custom_call.1} parent=19 // pred_region
          %s113 = sand.u32 %s46, 1
          %s114 = scalar_lea.sflag [#allocation4], %s113
          %s115 = sand.u32 %s46, 1
          %s116 = smul.addr %s115, 8
          %s117 = scalar_lea.vmem [#allocation3], %s116
          %119 = vsyncadd %s114, 0
          %s120 = smul.addr %s15, 2
          %s121 = smul.addr %s120, 4
          %s122 = scalar_lea.hbm %s1, %s121
          %s124 = sshll.u32 %s122, 4
          %s125 = int_to_ptr.hbm [resolvable:$true] %s124
          %s126 = sshll.u32 %s117, 4
          %s127 = int_to_ptr.vmem [resolvable:$true] %s126
          %129 = dma.hbm_to_vmem [thread:$0]  %s125, 128, %s127, %s114
        $region24: #{tpu_custom_call.1} parent=19 // pred_fallthru
          _
      $region20: #{tpu_custom_call.1} parent=5 // pred_fallthru
        _
      %p130 = scmp.le.s32.totalorder 1, %s15
      %p131 = scmp.lt.s32.totalorder %s15, 3
      %p132 = pnand %p130, %p131
      %p133 = pneg %p132
      // Predicated region
      $region25: #{tpu_custom_call.1} parent=5 // pred_check
        _
      $region26: #{tpu_custom_call.1} parent=5 // pred_check_branch
        %135 = sbr.rel (%p132) target = $region28
      $region27: #{tpu_custom_call.1} parent=5 // pred_region
        %s136 = ssub.s32 %s15, 1
        %s137 = sand.u32 %s49, 1
        %s138 = scalar_lea.sflag [#allocation4], %s137
        %s139 = sand.u32 %s49, 1
        %s140 = smul.addr %s139, 8
        %s141 = scalar_lea.vmem [#allocation3], %s140
        // Predicated region
        $region29: #{tpu_custom_call.1} parent=27 // pred_check
          %p142 = pneg %p62
        $region30: #{tpu_custom_call.1} parent=27 // pred_check_branch
          %144 = sbr.rel (%p142) target = $region32
        $region31: #{tpu_custom_call.1} parent=27 // pred_region
          %146 = dma.done %s138, 128
        $region32: #{tpu_custom_call.1} parent=27 // pred_fallthru
          _
        %p147 = pneg %p36
        %p148 = pneg %p33
        %s149 = sand.u32 %s49, 1
        %s150 = scalar_lea.sflag [#allocation4], %s149
        %s151 = sand.u32 %s49, 1
        %s152 = smul.addr %s151, 8
        %s153 = scalar_lea.vmem [#allocation3], %s152
        %p154 = pneg %p62
        %p155 = pneg %p59
        %p156 = pneg %p88
        %p157 = pneg %p85
        %s158 = sand.u32 %s75, 1
        %s159 = scalar_lea.sflag [#allocation5], %s158
        %s160 = sand.u32 %s75, 1
        %s161 = smul.addr %s160, 8
        %s162 = scalar_lea.vmem [#allocation6], %s161
        %v163 = vld [vmem:[%s141] sm:$0xff]
        %165 = vst [vmem:[#allocation1] ss:$2 sm:$0xff] %v163
        %v166 = vld.sshfl [vmem:[#allocation1] sm:$0xff pattern:$0x75316420]
        %v167 = vld.sshfl [vmem:[#allocation1 + $0x8] sm:$0xff pattern:$0x75316420]
        %170 = vst [vmem:[#allocation1] ss:$2 sm:$0xff] %v163
        %v171 = vld.sshfl [vmem:[#allocation1] sm:$0xff pattern:$0x75316420]
        %v172 = vld.sshfl [vmem:[#allocation1 + $0x8] sm:$0xff pattern:$0x75316420]
        %175 = vmatpush.xpose.msra.mxu0 0.0
        %176 = vmatpush.xpose.msra.mxu0 0.0
        %177 = vmatpush.xpose.msra.mxu0 0.0
        %178 = vmatpush.xpose.msra.mxu0 0.0
        %179 = vmatpush.xpose.msra.mxu0 0.0
        %180 = vmatpush.xpose.msra.mxu0 0.0
        %181 = vmatpush.xpose.msra.mxu0 0.0
        %182 = vmatpush.xpose.msra.mxu0 0.0
        %183 = vmatpush.xpose.msra.mxu0 0.0
        %184 = vmatpush.xpose.msra.mxu0 0.0
        %185 = vmatpush.xpose.msra.mxu0 0.0
        %186 = vmatpush.xpose.msra.mxu0 0.0
        %187 = vmatpush.xpose.msra.mxu0 0.0
        %188 = vmatpush.xpose.msra.mxu0 0.0
        %189 = vmatpush.xpose.msra.mxu0 0.0
        %190 = vmatpush.xpose.msra.mxu0 %v171
        %191 = vmatmul.f32.gmra.mxu0 %v166
        %v192 = vpop.f32.mrf.mxu0
        %v193 = vadd.f32 0.0, %v192
        %194 = vdwg.mxu0
        %195 = vmatpush.xpose.msra.mxu0 0.0
        %196 = vmatpush.xpose.msra.mxu0 0.0
        %197 = vmatpush.xpose.msra.mxu0 0.0
        %198 = vmatpush.xpose.msra.mxu0 0.0
        %199 = vmatpush.xpose.msra.mxu0 0.0
        %200 = vmatpush.xpose.msra.mxu0 0.0
        %201 = vmatpush.xpose.msra.mxu0 0.0
        %202 = vmatpush.xpose.msra.mxu0 0.0
        %203 = vmatpush.xpose.msra.mxu0 0.0
        %204 = vmatpush.xpose.msra.mxu0 0.0
        %205 = vmatpush.xpose.msra.mxu0 0.0
        %206 = vmatpush.xpose.msra.mxu0 0.0
        %207 = vmatpush.xpose.msra.mxu0 0.0
        %208 = vmatpush.xpose.msra.mxu0 0.0
        %209 = vmatpush.xpose.msra.mxu0 0.0
        %210 = vmatpush.xpose.msra.mxu0 %v172
        %211 = vmatmul.f32.gmra.mxu0 %v167
        %v212 = vpop.f32.mrf.mxu0
        %v213 = vadd.f32 %v193, %v212
        %214 = vdwg.mxu0
        %vm215 = vcmask 27648
        %v216 = vsel %vm215, %v213, inf
        %217 = vmin.xlane.f32.xlu0 %v216
        %v218 = vpop.xlane.xlu0 %217
        %v219 = vsub.f32 %v218, %v213
        %v220 = vmul.f32 %v219, 1.442695
        %v221 = vpow.pop %v220
        %v222 = vsel %vm215, %v221, 0.0
        %223 = vadd.xlane.f32.xlu0 %v222
        %v224 = vpop.xlane.xlu0 %223
        %v225 = vrcp.pop %v224
        %v226 = vmul.f32 %v224, %v225
        %v227 = vsub.f32 1.0, %v226
        %v228 = vmul.f32 %v225, %v227
        %v229 = vadd.f32 %v225, %v228
        %vm230 = vweird.f32 %v224
        %vm231 = vweird.f32 %v225
        %vm232 = vmor %vm230, %vm231
        %v233 = vsel %vm232, %v225, %v229
        %v234 = vand.u32 2147483647, %v224
        %vm235 = vcmp.eq.f32.partialorder %v234, 8.507059e+37
        %v236 = vand.u32 %v224, 2147483648
        %v237 = vor.u32 1.1754944e-38, %v236
        %v238 = vsel %vm235, %v237, %v233
        %v239 = vmul.f32 %v221, %v238
        %240 = vst [vmem:[#allocation1] ss:$2 sm:$0xff] %v163
        %v241 = vld.sshfl [vmem:[#allocation1] sm:$0xff pattern:$0x75316420]
        %v242 = vld.sshfl [vmem:[#allocation1 + $0x8] sm:$0xff pattern:$0x75316420]
        %vm243 = vcmask 31744
        %v245 = vsel %vm243, %v239, 0
        %vm247 = vcmask 1043456
        %v248 = vsel %vm247, %v241, 0
        %v250 = vsel %vm247, %v242, 0
        %252 = vmatpush.msra.mxu0 0.0
        %253 = vmatpush.msra.mxu0 0.0
        %254 = vmatpush.msra.mxu0 0.0
        %255 = vmatpush.msra.mxu0 0.0
        %256 = vmatpush.msra.mxu0 0.0
        %257 = vmatpush.msra.mxu0 0.0
        %258 = vmatpush.msra.mxu0 0.0
        %259 = vmatpush.msra.mxu0 0.0
        %260 = vmatpush.msra.mxu0 0.0
        %261 = vmatpush.msra.mxu0 0.0
        %262 = vmatpush.msra.mxu0 0.0
        %263 = vmatpush.msra.mxu0 0.0
        %264 = vmatpush.msra.mxu0 0.0
        %265 = vmatpush.msra.mxu0 0.0
        %266 = vmatpush.msra.mxu0 0.0
        %267 = vmatpush.msra.mxu0 %v248
        %268 = vmatmul.f32.gmra.mxu0 %v245
        %v269 = vpop.f32.mrf.mxu0
        %v270 = vadd.f32 0.0, %v269
        %271 = vdwg.mxu0
        %272 = vmatpush.msra.mxu0 0.0
        %273 = vmatpush.msra.mxu0 0.0
        %274 = vmatpush.msra.mxu0 0.0
        %275 = vmatpush.msra.mxu0 0.0
        %276 = vmatpush.msra.mxu0 0.0
        %277 = vmatpush.msra.mxu0 0.0
        %278 = vmatpush.msra.mxu0 0.0
        %279 = vmatpush.msra.mxu0 0.0
        %280 = vmatpush.msra.mxu0 0.0
        %281 = vmatpush.msra.mxu0 0.0
        %282 = vmatpush.msra.mxu0 0.0
        %283 = vmatpush.msra.mxu0 0.0
        %284 = vmatpush.msra.mxu0 0.0
        %285 = vmatpush.msra.mxu0 0.0
        %286 = vmatpush.msra.mxu0 0.0
        %287 = vmatpush.msra.mxu0 %v250
        %288 = vmatmul.f32.gmra.mxu0 %v245
        %v289 = vpop.f32.mrf.mxu0
        %v290 = vadd.f32 0.0, %v289
        %291 = vdwg.mxu0
        %s292 = sld [smem:[#allocation2]]
        %v293 = vstv %s292
        %v294 = vmul.f32 %v293, %v270
        %v295 = vmul.f32 %v293, %v290
        %296 = vst [vmem:[#allocation1] ss:$2 sm:$0xff] %v163
        %v297 = vld.sshfl [vmem:[#allocation1] sm:$0xff pattern:$0x75316420]
        %v298 = vld.sshfl [vmem:[#allocation1 + $0x8] sm:$0xff pattern:$0x75316420]
        %v301 = vadd.f32 %v294, %v297
        %v302 = vadd.f32 %v295, %v298
        %v305 = vrot.slane %v302, 4
        %v306 = vsel %vm247, %v301, %v305
        %308 = vst [vmem:[%s162] sm:$0xff] %v306
        %s309 = sand.u32 %s75, 1
        %s310 = scalar_lea.sflag [#allocation5], %s309
        %s311 = sand.u32 %s75, 1
        %s312 = smul.addr %s311, 8
        %s313 = scalar_lea.vmem [#allocation6], %s312
        // Predicated region
        $region33: #{tpu_custom_call.1} parent=27 // pred_check
          %p314 = pneg %p85
        $region34: #{tpu_custom_call.1} parent=27 // pred_check_branch
          %316 = sbr.rel (%p314) target = $region36
        $region35: #{tpu_custom_call.1} parent=27 // pred_region
          %318 = vsyncadd %s310, 0
          %s319 = smul.addr %s20, 2
          %s320 = smul.addr %s319, 4
          %s321 = scalar_lea.hbm %s2, %s320
          %s323 = sshll.u32 %s313, 4
          %s324 = int_to_ptr.vmem [resolvable:$true] %s323
          %s325 = sshll.u32 %s321, 4
          %s326 = int_to_ptr.hbm [resolvable:$true] %s325
          %328 = dma.vmem_to_hbm [thread:$0]  %s324, 128, %s326, %s310
        $region36: #{tpu_custom_call.1} parent=27 // pred_fallthru
          _
      $region28: #{tpu_custom_call.1} parent=5 // pred_fallthru
        _
      %p329 = scmp.le.s32.totalorder 2, %s15
      // Predicated region
      $region37: #{tpu_custom_call.1} parent=5 // pred_check
        %p330 = pneg %p329
      $region38: #{tpu_custom_call.1} parent=5 // pred_check_branch
        %332 = sbr.rel (%p330) target = $region40
      $region39: #{tpu_custom_call.1} parent=5 // pred_region
        %s333 = ssub.s32 %s15, 2
        // Predicated region
        $region41: #{tpu_custom_call.1} parent=39 // pred_check
          %p334 = pneg %p91
        $region42: #{tpu_custom_call.1} parent=39 // pred_check_branch
          %336 = sbr.rel (%p334) target = $region44
        $region43: #{tpu_custom_call.1} parent=39 // pred_region
          %s337 = sand.u32 %s76, 1
          %s338 = scalar_lea.sflag [#allocation5], %s337
          %s339 = sand.u32 %s76, 1
          %s340 = smul.addr %s339, 8
          %s341 = scalar_lea.vmem [#allocation6], %s340
          %343 = dma.done %s338, 128
        $region44: #{tpu_custom_call.1} parent=39 // pred_fallthru
          _
      $region40: #{tpu_custom_call.1} parent=5 // pred_fallthru
        _
    $region6: #{tpu_custom_call.1} parent=1 // loop_footer
      %s19 = sadd.s32 1, %s15
    $region7: #{tpu_custom_call.1} parent=1 // loop_footer_branch
      %14 = sbr.rel target = $region3
    $region8: #{tpu_custom_call.1} parent=1 // loop_exit
      _
    %344 = vsyncpa [#allocation4], 1
    %s345 = scalar_lea.sflag [#allocation4], 1
    %346 = vsyncpa %s345, 1
    %347 = vsyncpa [#allocation5], 1
    %s348 = scalar_lea.sflag [#allocation5], 1
    %349 = vsyncpa %s348, 1

</llo_original>
